<compile_context>
chip_gen: v5e
topology: v5e:2x2
jax: 0.10.0
libtpu: 0.0.40
codegen_flags: <defaults>
</compile_context>

<pallas_src>
import functools

import jax
import jax.numpy as jnp
from jax.experimental import pallas as pl
from jax.experimental.pallas import tpu as pltpu

EPS = 0.001


def _round_up(x, m):
    return (x + m - 1) // m * m


def _conv_stats_kernel(p_ref, w_ref, b_ref, y_ref, stats_ref, *, tm, m_valid, m_padded):
    """Pass 1: y_tile = W @ patches_tile + b (f32 accum); per-tile channel sum / sumsq."""
    # p_ref: [K, TM] bf16 ; w_ref: [C_out, K] bf16 ; b_ref: [C_out, 1] f32
    y = jnp.dot(w_ref[...], p_ref[...], preferred_element_type=jnp.float32)  # [C_out, TM]
    y = y + b_ref[...]
    y_ref[...] = y

    if m_padded != m_valid:  # static: exclude zero-padded columns from BN statistics
        col = jax.lax.broadcasted_iota(jnp.int32, y.shape, 1) + pl.program_id(0) * tm
        y = jnp.where(col < m_valid, y, 0.0)
    s1 = jnp.sum(y, axis=1, keepdims=True)       # [C_out, 1]
    s2 = jnp.sum(y * y, axis=1, keepdims=True)   # [C_out, 1]
    stats_ref[0] = jnp.concatenate([s1, s2], axis=1)  # [C_out, 2]


def _bn_relu_kernel(y_ref, scale_ref, shift_ref, o_ref):
    """Pass 2: folded BN affine + ReLU (one mul + one add per element)."""
    o_ref[...] = jnp.maximum(y_ref[...] * scale_ref[...] + shift_ref[...], 0.0)


def _im2col_t(x, kh, kw, stride, padding):
    """NCHW x -> patches_T [K, M]; K ordered (c,i,j) like PyTorch weight flattening,
    M ordered (n, h_out, w_out) row-major."""
    n, c, h, w = x.shape
    xp = jnp.pad(x, ((0, 0), (0, 0), (padding, padding), (padding, padding)))
    h_out = (h + 2 * padding - kh) // stride + 1
    w_out = (w + 2 * padding - kw) // stride + 1
    cols = []
    for i in range(kh):
        for j in range(kw):
            cols.append(xp[:, :, i:i + stride * h_out:stride, j:j + stride * w_out:stride])
    p = jnp.stack(cols, axis=2)                 # [N, C, kh*kw, H_out, W_out]
    p = p.transpose(1, 2, 0, 3, 4)              # [C, kh*kw, N, H_out, W_out]
    return p.reshape(c * kh * kw, n * h_out * w_out), h_out, w_out


def basic_conv2d(x, conv_w, conv_b, bn_gamma, bn_beta, *, stride=1, padding=1, tm_max=2048):
    """x: NCHW float32. conv_w: [C_out, C_in, kh, kw]. Returns NCHW float32."""
    n, c_in, h, w = x.shape
    c_out, _, kh, kw = conv_w.shape
    k = c_in * kh * kw

    patches_t, h_out, w_out = _im2col_t(x, kh, kw, stride, padding)   # [K, M]
    m = n * h_out * w_out

    tm = min(tm_max, _round_up(m, 128))
    m_pad = _round_up(m, tm)
    n_tiles = m_pad // tm
    if m_pad != m:
        patches_t = jnp.pad(patches_t, ((0, 0), (0, m_pad - m)))

    patches_bf16 = patches_t.astype(jnp.bfloat16)
    w_mat = conv_w.reshape(c_out, k).astype(jnp.bfloat16)             # [C_out, K]
    b_col = conv_b.reshape(c_out, 1).astype(jnp.float32)

    compiler_params = pltpu.CompilerParams(
        dimension_semantics=("parallel",),
        vmem_limit_bytes=32 * 1024 * 1024,
    )

    # ---- Pass 1: conv matmul + bias, per-tile BN partial sums -------------------------
    kernel_a = functools.partial(_conv_stats_kernel, tm=tm, m_valid=m, m_padded=m_pad)
    y_t, stats = pl.pallas_call(
        kernel_a,
        grid=(n_tiles,),
        in_specs=[
            pl.BlockSpec((k, tm), lambda i: (0, i)),        # patches tile (bf16)
            pl.BlockSpec((c_out, k), lambda i: (0, 0)),     # weights, resident
            pl.BlockSpec((c_out, 1), lambda i: (0, 0)),     # bias, resident
        ],
        out_specs=(
            pl.BlockSpec((c_out, tm), lambda i: (0, i)),    # conv output tile (f32)
            pl.BlockSpec((1, c_out, 2), lambda i: (i, 0, 0)),  # per-tile [sum, sumsq]
        ),
        out_shape=(
            jax.ShapeDtypeStruct((c_out, m_pad), jnp.float32),
            jax.ShapeDtypeStruct((n_tiles, c_out, 2), jnp.float32),
        ),
        compiler_params=compiler_params,
        cost_estimate=pl.CostEstimate(
            flops=2 * m_pad * k * c_out,
            transcendentals=0,
            bytes_accessed=(patches_bf16.size * 2 + w_mat.size * 2
                            + (c_out * m_pad + n_tiles * c_out * 2 + c_out) * 4),
        ),
    )(patches_bf16, w_mat, b_col)

    # ---- Fold BN (training-mode batch stats, biased variance) into scale/shift --------
    count = float(m)
    sums = jnp.sum(stats[:, :, 0], axis=0)
    sumsq = jnp.sum(stats[:, :, 1], axis=0)
    mean = sums / count
    var = jnp.maximum(sumsq / count - mean * mean, 0.0)
    inv_std = jax.lax.rsqrt(var + EPS)
    scale = (bn_gamma.astype(jnp.float32) * inv_std).reshape(c_out, 1)
    shift = (bn_beta.astype(jnp.float32) - mean * scale[:, 0]).reshape(c_out, 1)

    # ---- Pass 2: y * scale + shift, ReLU ----------------------------------------------
    out_t = pl.pallas_call(
        _bn_relu_kernel,
        grid=(n_tiles,),
        in_specs=[
            pl.BlockSpec((c_out, tm), lambda i: (0, i)),
            pl.BlockSpec((c_out, 1), lambda i: (0, 0)),
            pl.BlockSpec((c_out, 1), lambda i: (0, 0)),
        ],
        out_specs=pl.BlockSpec((c_out, tm), lambda i: (0, i)),
        out_shape=jax.ShapeDtypeStruct((c_out, m_pad), jnp.float32),
        compiler_params=compiler_params,
    )(y_t, scale, shift)

    # [C_out, M] -> NCHW
    out_t = out_t[:, :m].reshape(c_out, n, h_out, w_out)
    return out_t.transpose(1, 0, 2, 3)


if __name__ == "__main__":
    # Small shapes consistent with the module: BasicConv2d(4, 8, kernel_size=3, padding=1)
    N, C_IN, H, W = 2, 4, 16, 16
    C_OUT, KH, KW = 8, 3, 3

    key = jax.random.PRNGKey(0)
    k_x, k_w, k_b = jax.random.split(key, 3)

    x = jax.random.normal(k_x, (N, C_IN, H, W), dtype=jnp.float32)

    # Deterministic parameter init (mimics PyTorch default scales; no checkpoint load).
    fan_in = C_IN * KH * KW
    bound = 1.0 / (fan_in ** 0.5)
    conv_w = jax.random.uniform(k_w, (C_OUT, C_IN, KH, KW), jnp.float32, -bound, bound)
    conv_b = jax.random.uniform(k_b, (C_OUT,), jnp.float32, -bound, bound)
    bn_gamma = jnp.ones((C_OUT,), jnp.float32)   # PyTorch BatchNorm2d default weight
    bn_beta = jnp.zeros((C_OUT,), jnp.float32)   # PyTorch BatchNorm2d default bias

    out = basic_conv2d(x, conv_w, conv_b, bn_gamma, bn_beta, stride=1, padding=1)
    jax.block_until_ready(out)

    assert out.shape == (N, C_OUT, H, W)
    assert bool(jnp.all(out >= 0.0))  # ReLU sanity
    print("KERNEL_OK")
</pallas_src>

<mosaic_0001>
module attributes {stable_mosaic.version = 11 : i64} {
  func.func @_conv_stats_kernel(%arg0: i32, %arg1: memref<36x512xbf16, #tpu.memory_space<vmem>>, %arg2: memref<8x36xbf16, #tpu.memory_space<vmem>>, %arg3: memref<8x1xf32, #tpu.memory_space<vmem>>, %arg4: memref<8x512xf32, #tpu.memory_space<vmem>>, %arg5: memref<1x8x2xf32, #tpu.memory_space<vmem>>) attributes {dimension_semantics = [#tpu.dimension_semantics<parallel>], iteration_bounds = array<i64: 1>, scalar_prefetch = 0 : i64, scratch_operands = 0 : i64, tpu.core_type = #tpu.core_type<tc>, window_params = [{transform_indices = @transform_0, window_bounds = array<i64: 36, 512>}, {pipeline_mode = #tpu.pipeline_mode<synchronous>, transform_indices = @transform_1, window_bounds = array<i64: 8, 36>}, {pipeline_mode = #tpu.pipeline_mode<synchronous>, transform_indices = @transform_2, window_bounds = array<i64: 8, 1>}, {transform_indices = @transform_3, window_bounds = array<i64: 8, 512>}, {transform_indices = @transform_4, window_bounds = array<i64: 1, 8, 2>}]} {
    %c0 = arith.constant 0 : index
    %c0_0 = arith.constant 0 : index
    %0 = vector.load %arg2[%c0, %c0_0] : memref<8x36xbf16, #tpu.memory_space<vmem>>, vector<8x36xbf16>
    %c0_1 = arith.constant 0 : index
    %c0_2 = arith.constant 0 : index
    %1 = vector.load %arg1[%c0_1, %c0_2] : memref<36x512xbf16, #tpu.memory_space<vmem>>, vector<36x512xbf16>
    %cst = arith.constant dense<0.000000e+00> : vector<8x512xf32>
    %2 = tpu.matmul %0, %1, %cst {dimension_numbers = #tpu.dot_dimension_numbers<[1], [0], [0], [1], [0, 0, 1, 1], [], []>} : vector<8x36xbf16>, vector<36x512xbf16>, vector<8x512xf32> -> vector<8x512xf32>
    %c0_3 = arith.constant 0 : index
    %c0_4 = arith.constant 0 : index
    %3 = vector.load %arg3[%c0_3, %c0_4] : memref<8x1xf32, #tpu.memory_space<vmem>>, vector<8x1xf32>
    %4 = vector.broadcast %3 : vector<8x1xf32> to vector<8x512xf32>
    %5 = arith.addf %2, %4 : vector<8x512xf32>
    %c0_5 = arith.constant 0 : index
    %c0_6 = arith.constant 0 : index
    %6 = vector.load %arg4[%c0_5, %c0_6] : memref<8x512xf32, #tpu.memory_space<vmem>>, vector<8x512xf32>
    tpu.vector_store %arg4[%c0_5, %c0_6], %5 {strides = array<i32>} : memref<8x512xf32, #tpu.memory_space<vmem>>, vector<8x512xf32>,
    %cst_7 = arith.constant dense<0.000000e+00> : vector<8xf32>
    %7 = vector.multi_reduction <add>, %5, %cst_7 [1] : vector<8x512xf32> to vector<8xf32>
    %8 = vector.shape_cast %7 : vector<8xf32> to vector<8x1xf32>
    %9 = arith.mulf %5, %5 : vector<8x512xf32>
    %cst_8 = arith.constant dense<0.000000e+00> : vector<8xf32>
    %10 = vector.multi_reduction <add>, %9, %cst_8 [1] : vector<8x512xf32> to vector<8xf32>
    %11 = vector.shape_cast %10 : vector<8xf32> to vector<8x1xf32>
    %12 = tpu.concatenate %8, %11 in 1 : vector<8x1xf32>, vector<8x1xf32> -> vector<8x2xf32>
    %c0_9 = arith.constant 0 : index
    %c0_10 = arith.constant 0 : index
    %c0_11 = arith.constant 0 : index
    %13 = vector.load %arg5[%c0_9, %c0_10, %c0_11] : memref<1x8x2xf32, #tpu.memory_space<vmem>>, vector<1x8x2xf32>
    %14 = vector.shape_cast %13 : vector<1x8x2xf32> to vector<8x2xf32>
    %15 = vector.shape_cast %12 : vector<8x2xf32> to vector<1x8x2xf32>
    tpu.vector_store %arg5[%c0_9, %c0_10, %c0_11], %15 {strides = array<i32>} : memref<1x8x2xf32, #tpu.memory_space<vmem>>, vector<1x8x2xf32>,
    return
  }
  func.func @transform_0(%arg0: i32) -> (i32, i32) {
    %c0_i32 = arith.constant 0 : i32
    %c0_i32_0 = arith.constant 0 : i32
    return %c0_i32, %arg0 : i32, i32
  }
  func.func @transform_1(%arg0: i32) -> (i32, i32) {
    %c0_i32 = arith.constant 0 : i32
    %c0_i32_0 = arith.constant 0 : i32
    %c0_i32_1 = arith.constant 0 : i32
    return %c0_i32, %c0_i32_0 : i32, i32
  }
  func.func @transform_2(%arg0: i32) -> (i32, i32) {
    %c0_i32 = arith.constant 0 : i32
    %c0_i32_0 = arith.constant 0 : i32
    %c0_i32_1 = arith.constant 0 : i32
    return %c0_i32, %c0_i32_0 : i32, i32
  }
  func.func @transform_3(%arg0: i32) -> (i32, i32) {
    %c0_i32 = arith.constant 0 : i32
    %c0_i32_0 = arith.constant 0 : i32
    return %c0_i32, %arg0 : i32, i32
  }
  func.func @transform_4(%arg0: i32) -> (i32, i32, i32) {
    %c0_i32 = arith.constant 0 : i32
    %c0_i32_0 = arith.constant 0 : i32
    %c0_i32_1 = arith.constant 0 : i32
    return %arg0, %c0_i32, %c0_i32_0 : i32, i32, i32
  }
}

</mosaic_0001>

<llo_original>
// kernel: tpu_custom_call.1
$region0: #{tpu_custom_call.1}
  #allocation0 [shape = 'u32[]', space=smem, size = 0x4, offset = 0x4, fixed_abs, tag = 'smem constant byte address 0x4 - core index']
  #allocation1 [shape = 'u32[72,128]{1,0:T(1,128)}', space=vmem, size = 0x9000, scoped, tag = 'internal scratch']
  %s0 = inlined_call_operand.hbm [shape: bf16[36,512], index: 0, kind: input, shape index: {}]
  %s1 = inlined_call_operand.vmem [shape: bf16[8,36], index: 1, kind: input, shape index: {}]
  %s2 = inlined_call_operand.vmem [shape: f32[8,1], index: 2, kind: input, shape index: {}]
  %s3 = inlined_call_operand.hbm [shape: f32[8,512], index: 3, kind: output, shape index: {0}]
  %s4 = inlined_call_operand.vmem [shape: f32[1,8,2], index: 4, kind: output, shape index: {1}]
  %5 = xla_tuple %s3, %s4
  %s6 = sld [smem:[#allocation0]]
  $region34: #{tpu_custom_call.1} parent=0
    _
  %s8 = ssub.s32 1, %s6
  %s9 = scalar_select 0, %s8, %s6
  $region1: #{tpu_custom_call.1} parent=0
    #allocation2 [shape = 'u8[40960]{0}', space=vmem, size = 0xa000, scoped, tag = 'input window, operand 0, single buffered']
    #allocation3 [shape = 's32[1]{0}', space=sflag, size = 0x4, scoped, tag = 'scoped memory for tpu_custom_call.1']
    #allocation4 [shape = 's32[1]{0}', space=sflag, size = 0x4, scoped, tag = 'scoped memory for tpu_custom_call.1']
    #allocation5 [shape = 'u8[16384]{0}', space=vmem, size = 0x4000, scoped, tag = 'output window, operand 0, single buffered']
    %10 = vsyncpa [#allocation3], 0
    %11 = vsyncpa [#allocation4], 0
    // Predicated region
    $region2: #{tpu_custom_call.1} parent=1 // pred_check
      _
    $region3: #{tpu_custom_call.1} parent=1 // pred_check_branch
      %13 = sbr.rel (0) target = $region5
    $region4: #{tpu_custom_call.1} parent=1 // pred_region
      %15 = vsyncadd [#allocation3], 0
      %s16 = sshll.u32 %s0, 4
      %s17 = int_to_ptr.hbm [resolvable:$true] %s16
      %s18 = sshll.u32 [#allocation2], 4
      %s19 = int_to_ptr.vmem [resolvable:$true] %s18
      %24 = dma.hbm_to_vmem [thread:$0]  %s17, 1280, %s19, [#allocation3], 256, 256, 16
    $region5: #{tpu_custom_call.1} parent=1 // pred_fallthru
      _
    // Predicated region
    $region6: #{tpu_custom_call.1} parent=1 // pred_check
      _
    $region7: #{tpu_custom_call.1} parent=1 // pred_check_branch
      %26 = sbr.rel (0) target = $region9
    $region8: #{tpu_custom_call.1} parent=1 // pred_region
      _
    $region9: #{tpu_custom_call.1} parent=1 // pred_fallthru
      _
    // Predicated region
    $region10: #{tpu_custom_call.1} parent=1 // pred_check
      _
    $region11: #{tpu_custom_call.1} parent=1 // pred_check_branch
      %28 = sbr.rel (0) target = $region13
    $region12: #{tpu_custom_call.1} parent=1 // pred_region
      _
    $region13: #{tpu_custom_call.1} parent=1 // pred_fallthru
      _
    // Predicated region
    $region14: #{tpu_custom_call.1} parent=1 // pred_check
      _
    $region15: #{tpu_custom_call.1} parent=1 // pred_check_branch
      %30 = sbr.rel (0) target = $region17
    $region16: #{tpu_custom_call.1} parent=1 // pred_region
      %32 = dma.done [#allocation3], 1280
    $region17: #{tpu_custom_call.1} parent=1 // pred_fallthru
      _
    %v34 = vld [vmem:[%s1] sm:$0xf]
    %v35 = vld [vmem:[#allocation2] sm:$0xff]
    %v36 = vld [vmem:[#allocation2 + $0x8] sm:$0xff]
    %v37 = vld [vmem:[#allocation2 + $0x10] sm:$0xff]
    %v38 = vld [vmem:[#allocation2 + $0x18] sm:$0xff]
    %v39 = vld [vmem:[#allocation2 + $0x20] sm:$0xff]
    %v40 = vld [vmem:[#allocation2 + $0x28] sm:$0xff]
    %v41 = vld [vmem:[#allocation2 + $0x30] sm:$0xff]
    %v42 = vld [vmem:[#allocation2 + $0x38] sm:$0xff]
    %v43 = vld [vmem:[#allocation2 + $0x40] sm:$0x33]
    %v44 = vld [vmem:[#allocation2 + $0x48] sm:$0x33]
    %v45 = vld [vmem:[%s2] sm:$0xff]
    %47 = vset.pattern.permute.xlu0 0
    %48 = vperm.xlu0 %47, %v45
    %v49 = vpop.permute.xlu0 %48
    %v61 = vunpack.c.l.b16 %v35
    %v62 = vunpack.c.h.b16 %v35
    %v63 = vunpack.c.l.b16 %v36
    %v64 = vunpack.c.h.b16 %v36
    %v65 = vunpack.c.l.b16 %v37
    %v66 = vunpack.c.h.b16 %v37
    %v67 = vunpack.c.l.b16 %v38
    %v68 = vunpack.c.h.b16 %v38
    %v69 = vunpack.c.l.b16 %v39
    %v70 = vunpack.c.h.b16 %v39
    %v71 = vunpack.c.l.b16 %v40
    %v72 = vunpack.c.h.b16 %v40
    %v73 = vunpack.c.l.b16 %v41
    %v74 = vunpack.c.h.b16 %v41
    %v75 = vunpack.c.l.b16 %v42
    %v76 = vunpack.c.h.b16 %v42
    %v77 = vunpack.c.l.b16 %v43
    %v78 = vunpack.c.h.b16 %v43
    %v79 = vunpack.c.l.b16 %v44
    %v80 = vunpack.c.h.b16 %v44
    %v81 = vpack.c.b16 %v65, %v61
    %v82 = vpack.c.b16 %v66, %v62
    %v83 = vpack.c.b16 %v67, %v63
    %v84 = vpack.c.b16 %v68, %v64
    %v85 = vpack.c.b16 %v73, %v69
    %v86 = vpack.c.b16 %v74, %v70
    %v87 = vpack.c.b16 %v75, %v71
    %v88 = vpack.c.b16 %v76, %v72
    %v89 = vpack.c.b16 %v77, %v77
    %v90 = vpack.c.b16 %v78, %v78
    %v91 = vpack.c.b16 %v79, %v79
    %v92 = vpack.c.b16 %v80, %v80
    %vm101 = vcmask 293888
    %v103 = vsel %vm101, %v34, 0
    %vm105 = vcmask 1041408
    %v107 = vsel %vm105, %v89, 0
    %v110 = vsel %vm105, %v90, 0
    %v113 = vsel %vm105, %v91, 0
    %v116 = vsel %vm105, %v92, 0
    %118 = vmatpush.bf16.msra.mxu0 0
    %119 = vmatpush.bf16.msra.mxu0 0
    %120 = vmatpush.bf16.msra.mxu0 0
    %121 = vmatpush.bf16.msra.mxu0 0
    %122 = vmatpush.bf16.msra.mxu0 0
    %123 = vmatpush.bf16.msra.mxu0 %v107
    %124 = vmatpush.bf16.msra.mxu0 %v85
    %125 = vmatpush.bf16.msra.mxu0 %v81
    %126 = vmatmul.bf16.gmra.mxu0 %v103
    %v127 = vpop.f32.mrf.mxu0
    %v128 = vadd.f32 %v49, %v127
    %v129 = vpop.f32.mrf.mxu0
    %130 = vdwg.mxu0
    %131 = vmatpush.bf16.msra.mxu0 0
    %132 = vmatpush.bf16.msra.mxu0 0
    %133 = vmatpush.bf16.msra.mxu0 0
    %134 = vmatpush.bf16.msra.mxu0 0
    %135 = vmatpush.bf16.msra.mxu0 0
    %136 = vmatpush.bf16.msra.mxu0 %v110
    %137 = vmatpush.bf16.msra.mxu0 %v86
    %138 = vmatpush.bf16.msra.mxu0 %v82
    %139 = vmatmul.bf16.gmra.mxu0 %v103
    %v140 = vpop.f32.mrf.mxu0
    %v141 = vadd.f32 %v49, %v140
    %v142 = vpop.f32.mrf.mxu0
    %143 = vdwg.mxu0
    %144 = vmatpush.bf16.msra.mxu0 0
    %145 = vmatpush.bf16.msra.mxu0 0
    %146 = vmatpush.bf16.msra.mxu0 0
    %147 = vmatpush.bf16.msra.mxu0 0
    %148 = vmatpush.bf16.msra.mxu0 0
    %149 = vmatpush.bf16.msra.mxu0 %v113
    %150 = vmatpush.bf16.msra.mxu0 %v87
    %151 = vmatpush.bf16.msra.mxu0 %v83
    %152 = vmatmul.bf16.gmra.mxu0 %v103
    %v153 = vpop.f32.mrf.mxu0
    %v154 = vadd.f32 %v49, %v153
    %v155 = vpop.f32.mrf.mxu0
    %156 = vdwg.mxu0
    %157 = vmatpush.bf16.msra.mxu0 0
    %158 = vmatpush.bf16.msra.mxu0 0
    %159 = vmatpush.bf16.msra.mxu0 0
    %160 = vmatpush.bf16.msra.mxu0 0
    %161 = vmatpush.bf16.msra.mxu0 0
    %162 = vmatpush.bf16.msra.mxu0 %v116
    %163 = vmatpush.bf16.msra.mxu0 %v88
    %164 = vmatpush.bf16.msra.mxu0 %v84
    %165 = vmatmul.bf16.gmra.mxu0 %v103
    %v166 = vpop.f32.mrf.mxu0
    %v167 = vadd.f32 %v49, %v166
    %v168 = vpop.f32.mrf.mxu0
    %169 = vdwg.mxu0
    %170 = vst [vmem:[#allocation5] sm:$0xff] %v128
    %171 = vst [vmem:[#allocation5 + $0x8] sm:$0xff] %v141
    %172 = vst [vmem:[#allocation5 + $0x10] sm:$0xff] %v154
    %173 = vst [vmem:[#allocation5 + $0x18] sm:$0xff] %v167
    %v174 = vadd.f32 %v128, %v141
    %v175 = vadd.f32 %v174, %v154
    %v176 = vadd.f32 %v175, %v167
    %177 = vadd.xlane.f32.xlu0 %v176
    %v178 = vpop.xlane.xlu0 %177
    %v179 = vmul.f32 %v128, %v128
    %v180 = vmul.f32 %v141, %v141
    %v181 = vmul.f32 %v154, %v154
    %v182 = vmul.f32 %v167, %v167
    %v183 = vadd.f32 %v179, %v180
    %v184 = vadd.f32 %v183, %v181
    %v185 = vadd.f32 %v184, %v182
    %186 = vadd.xlane.f32.xlu0 %v185
    %v187 = vpop.xlane.xlu0 %186
    %vm188 = vcmask 7168
    %v189 = vsel %vm188, %v178, %v187
    %vm190 = vcmask 15360
    %191 = vst.msk [vmem:[%s4] sm:$0xff] %vm190, %v189
    // Predicated region
    $region18: #{tpu_custom_call.1} parent=1 // pred_check
      _
    $region19: #{tpu_custom_call.1} parent=1 // pred_check_branch
      %193 = sbr.rel (0) target = $region21
    $region20: #{tpu_custom_call.1} parent=1 // pred_region
      %195 = vsyncadd [#allocation4], 0
      %s197 = sshll.u32 [#allocation5], 4
      %s198 = int_to_ptr.vmem [resolvable:$true] %s197
      %s199 = sshll.u32 %s3, 4
      %s200 = int_to_ptr.hbm [resolvable:$true] %s199
      %202 = dma.vmem_to_hbm [thread:$0]  %s198, 512, %s200, [#allocation4]
    $region21: #{tpu_custom_call.1} parent=1 // pred_fallthru
      _
    // Predicated region
    $region22: #{tpu_custom_call.1} parent=1 // pred_check
      _
    $region23: #{tpu_custom_call.1} parent=1 // pred_check_branch
      %204 = sbr.rel (0) target = $region25
    $region24: #{tpu_custom_call.1} parent=1 // pred_region
      _
    $region25: #{tpu_custom_call.1} parent=1 // pred_fallthru
      _
    // Predicated region
    $region26: #{tpu_custom_call.1} parent=1 // pred_check
      _
    $region27: #{tpu_custom_call.1} parent=1 // pred_check_branch
      %206 = sbr.rel (0) target = $region29
    $region28: #{tpu_custom_call.1} parent=1 // pred_region
      %208 = dma.done [#allocation4], 512
    $region29: #{tpu_custom_call.1} parent=1 // pred_fallthru
      _
    // Predicated region
    $region30: #{tpu_custom_call.1} parent=1 // pred_check
      _
    $region31: #{tpu_custom_call.1} parent=1 // pred_check_branch
      %210 = sbr.rel (0) target = $region33
    $region32: #{tpu_custom_call.1} parent=1 // pred_region
      _
    $region33: #{tpu_custom_call.1} parent=1 // pred_fallthru
      _
    %211 = vsyncpa [#allocation3], 1
    %212 = vsyncpa [#allocation4], 1

</llo_original>
